<compile_context>
chip_gen: v7x
topology: tpu7x:2x2x1
jax: 0.10.0
libtpu: 0.0.40
codegen_flags: <defaults>
</compile_context>

<pallas_src>
import jax
import jax.numpy as jnp
from jax.experimental import pallas as pl
from jax.experimental.pallas import tpu as pltpu


_VMEM_LIMIT = 32 * 1024 * 1024          # safe scoped limit on v5e/v6e/v7x
_FUSED_SLAB_BUDGET = 24 * 1024 * 1024   # headroom below the scoped limit


def _pick_hw_tile(hw, target=1024):
    """Largest multiple of 128 that divides hw and is <= target; else full hw."""
    if hw % 128 != 0:
        return hw
    t = min(target, hw)
    t -= t % 128
    if t <= 0:
        return hw
    while hw % t != 0:
        t -= 128
    return t


# ----------------------------------------------------------------------------
# Fused single-pass kernel: mean -> MLP -> threshold -> scale, per batch elem.
# ----------------------------------------------------------------------------
def _make_fused_kernel(inv_hw):
    def kernel(tlogit_ref, x_ref, w1t_ref, w2_ref, o_ref):
        x = x_ref[0]                                            # (C, HW), in VMEM
        # Spatial mean: lane reduce (XLU), result (C, 1).
        y = jnp.sum(x, axis=1, keepdims=True) * inv_hw
        # Squeeze-excite MLP on the VPU (M=1, hidden tiny -> no MXU).
        h = jnp.sum(y * w1t_ref[...], axis=0, keepdims=True)    # (1, hidden)
        h = jnp.maximum(h, 0.0)
        z = jnp.sum(w2_ref[...] * h, axis=1, keepdims=True)     # (C, 1)
        # sigmoid(z) >= thr  <=>  z >= logit(thr); skip the EUP sigmoid.
        keep = jnp.where(z >= tlogit_ref[0], 1.0, 0.0).astype(o_ref.dtype)
        o_ref[0] = x * keep                                     # broadcast over HW
    return kernel


# ----------------------------------------------------------------------------
# Two-pass fallback (only when a full (C, HW) slab would not fit in VMEM).
# ----------------------------------------------------------------------------
def _make_mask_kernel(inv_hw):
    def kernel(tlogit_ref, x_ref, w1t_ref, w2_ref, mask_ref, acc_ref):
        # x_ref block: (1, C, T)   acc_ref: (C, 1) f32 scratch (persists over t)
        t = pl.program_id(1)

        @pl.when(t == 0)
        def _():
            acc_ref[...] = jnp.zeros_like(acc_ref)

        acc_ref[...] += jnp.sum(x_ref[0], axis=1, keepdims=True)

        @pl.when(t == pl.num_programs(1) - 1)
        def _():
            y = acc_ref[...] * inv_hw                              # (C, 1) mean
            h = jnp.sum(y * w1t_ref[...], axis=0, keepdims=True)   # (1, hidden)
            h = jnp.maximum(h, 0.0)
            z = jnp.sum(w2_ref[...] * h, axis=1, keepdims=True)    # (C, 1)
            keep = jnp.where(z >= tlogit_ref[0], 1.0, 0.0)
            mask_ref[0] = keep.astype(mask_ref.dtype)

    return kernel


def _scale_kernel(x_ref, mask_ref, o_ref):
    # x_ref: (1, C, T);  mask_ref: (1, C, 1);  one VPU mul per vreg.
    o_ref[0] = x_ref[0] * mask_ref[0]


# ----------------------------------------------------------------------------
# Wrapper
# ----------------------------------------------------------------------------
def soft_threshold_attention(x_nchw, w1_pt, w2_pt, threshold=0.5,
                             hw_tile=1024, force_two_pass=False):
    """x_nchw: (B, C, H, W) float32.
    w1_pt: (hidden, C)  -- PyTorch Linear(C, hidden).weight
    w2_pt: (C, hidden)  -- PyTorch Linear(hidden, C).weight
    """
    B, C, H, W = x_nchw.shape
    HW = H * W
    hidden = w1_pt.shape[0]

    # Pure metadata reshape (no data movement): channels on sublanes, HW on lanes.
    x = x_nchw.reshape(B, C, HW)
    w1t = jnp.transpose(w1_pt)          # (C, hidden)  -- tiny
    w2 = w2_pt                          # (C, hidden)

    thr = jnp.asarray(threshold, dtype=jnp.float32)
    t_logit = (jnp.log(thr) - jnp.log1p(-thr)).reshape((1,))   # logit(threshold)

    itemsize = jnp.dtype(x.dtype).itemsize
    slab_bytes = C * HW * itemsize
    # Fused path needs 2x input + 2x output slabs (double buffering) + weights.
    fused_fits = (4 * slab_bytes + 2 * C * hidden * 4 + 4096) <= _FUSED_SLAB_BUDGET

    if fused_fits and not force_two_pass:
        out = pl.pallas_call(
            _make_fused_kernel(1.0 / HW),
            out_shape=jax.ShapeDtypeStruct((B, C, HW), x.dtype),
            grid_spec=pltpu.PrefetchScalarGridSpec(
                num_scalar_prefetch=0,
                grid=(B,),
                in_specs=[
                    pl.BlockSpec(memory_space=pltpu.MemorySpace.SMEM),   # logit(thr)
                    pl.BlockSpec((1, C, HW), lambda b: (b, 0, 0)),       # x slab
                    pl.BlockSpec((C, hidden), lambda b: (0, 0)),         # W1^T
                    pl.BlockSpec((C, hidden), lambda b: (0, 0)),         # W2
                ],
                out_specs=pl.BlockSpec((1, C, HW), lambda b: (b, 0, 0)),
            ),
            compiler_params=pltpu.CompilerParams(
                dimension_semantics=("parallel",),
                vmem_limit_bytes=_VMEM_LIMIT,
            ),
        )(t_logit, x, w1t, w2)
        return out.reshape(B, C, H, W)

    # ---------------- Two-pass fallback for very large C * HW -----------------
    T = _pick_hw_tile(HW, hw_tile)
    n_t = HW // T

    cparams_mask = pltpu.CompilerParams(
        dimension_semantics=("parallel", "arbitrary"),
        vmem_limit_bytes=_VMEM_LIMIT,
    )
    cparams_scale = pltpu.CompilerParams(
        dimension_semantics=("parallel", "parallel"),
        vmem_limit_bytes=_VMEM_LIMIT,
    )

    # Pass 1: per-(B, C) binary keep-mask.
    mask = pl.pallas_call(
        _make_mask_kernel(1.0 / HW),
        out_shape=jax.ShapeDtypeStruct((B, C, 1), jnp.float32),
        grid_spec=pltpu.PrefetchScalarGridSpec(
            num_scalar_prefetch=0,
            grid=(B, n_t),
            in_specs=[
                pl.BlockSpec(memory_space=pltpu.MemorySpace.SMEM),     # logit(thr)
                pl.BlockSpec((1, C, T), lambda b, t: (b, 0, t)),       # x
                pl.BlockSpec((C, hidden), lambda b, t: (0, 0)),        # W1^T
                pl.BlockSpec((C, hidden), lambda b, t: (0, 0)),        # W2
            ],
            out_specs=pl.BlockSpec((1, C, 1), lambda b, t: (b, 0, 0)),
            scratch_shapes=[pltpu.VMEM((C, 1), jnp.float32)],
        ),
        compiler_params=cparams_mask,
    )(t_logit, x, w1t, w2)

    # Pass 2: element-wise scale, lane-dense (T multiple of 128) output.
    out = pl.pallas_call(
        _scale_kernel,
        out_shape=jax.ShapeDtypeStruct((B, C, HW), x.dtype),
        grid_spec=pltpu.PrefetchScalarGridSpec(
            num_scalar_prefetch=0,
            grid=(B, n_t),
            in_specs=[
                pl.BlockSpec((1, C, T), lambda b, t: (b, 0, t)),       # x
                pl.BlockSpec((1, C, 1), lambda b, t: (b, 0, 0)),       # mask
            ],
            out_specs=pl.BlockSpec((1, C, T), lambda b, t: (b, 0, t)),
        ),
        compiler_params=cparams_scale,
    )(x, mask)

    return out.reshape(B, C, H, W)


def _reference(x_nchw, w1_pt, w2_pt, threshold=0.5):
    y = jnp.mean(x_nchw, axis=(2, 3))                      # (B, C)
    h = jnp.maximum(y @ w1_pt.T, 0.0)                      # (B, hidden)
    z = h @ w2_pt.T                                        # (B, C)
    s = jax.nn.sigmoid(z)
    mask = jnp.where(s >= threshold, 1.0, 0.0)
    return x_nchw * mask[:, :, None, None]


if __name__ == "__main__":
    # reduction_ratio=16 requires in_channels >= 16 -> C=32, hidden=2.
    # H=W=32 keeps shapes small; both the fused and two-pass paths are checked.
    B, C, H, W = 2, 32, 32, 32
    reduction_ratio = 16
    hidden = C // reduction_ratio
    threshold = 0.5

    key = jax.random.PRNGKey(0)
    kx, k1, k2 = jax.random.split(key, 3)
    x = jax.random.normal(kx, (B, C, H, W), dtype=jnp.float32)
    w1_pt = jax.random.normal(k1, (hidden, C), dtype=jnp.float32) * 0.2
    w2_pt = jax.random.normal(k2, (C, hidden), dtype=jnp.float32) * 0.2

    # Main (fused, single HBM read of x) path.
    out = soft_threshold_attention(x, w1_pt, w2_pt, threshold)
    out = jax.block_until_ready(out)
    ref = _reference(x, w1_pt, w2_pt, threshold)
    assert out.shape == (B, C, H, W)
    assert jnp.allclose(out, ref, atol=1e-5, rtol=1e-5)

    # Two-pass fallback path (used for very large C*HW), with a non-default
    # threshold to exercise the SMEM logit compare.
    out2 = soft_threshold_attention(x, w1_pt, w2_pt, 0.6, force_two_pass=True)
    out2 = jax.block_until_ready(out2)
    ref2 = _reference(x, w1_pt, w2_pt, 0.6)
    assert jnp.allclose(out2, ref2, atol=1e-5, rtol=1e-5)

    print("KERNEL_OK")
</pallas_src>

<mosaic_0001>
module attributes {stable_mosaic.version = 11 : i64} {
  func.func @kernel(%arg0: i32, %arg1: memref<1xf32, #tpu.memory_space<smem>>, %arg2: memref<1x32x1024xf32, #tpu.memory_space<vmem>>, %arg3: memref<32x2xf32, #tpu.memory_space<vmem>>, %arg4: memref<32x2xf32, #tpu.memory_space<vmem>>, %arg5: memref<1x32x1024xf32, #tpu.memory_space<vmem>>) attributes {dimension_semantics = [#tpu.dimension_semantics<parallel>], iteration_bounds = array<i64: 2>, scalar_prefetch = 0 : i64, scratch_operands = 0 : i64, tpu.core_type = #tpu.core_type<tc>, window_params = [{transform_indices = @transform_0, window_bounds = array<i64: 1>}, {transform_indices = @transform_1, window_bounds = array<i64: 1, 32, 1024>}, {pipeline_mode = #tpu.pipeline_mode<synchronous>, transform_indices = @transform_2, window_bounds = array<i64: 32, 2>}, {pipeline_mode = #tpu.pipeline_mode<synchronous>, transform_indices = @transform_3, window_bounds = array<i64: 32, 2>}, {transform_indices = @transform_4, window_bounds = array<i64: 1, 32, 1024>}]} {
    %c0 = arith.constant 0 : index
    %c0_0 = arith.constant 0 : index
    %c0_1 = arith.constant 0 : index
    %0 = vector.load %arg2[%c0, %c0_0, %c0_1] : memref<1x32x1024xf32, #tpu.memory_space<vmem>>, vector<1x32x1024xf32>
    %1 = vector.shape_cast %0 : vector<1x32x1024xf32> to vector<32x1024xf32>
    %cst = arith.constant dense<0.000000e+00> : vector<32xf32>
    %2 = vector.multi_reduction <add>, %1, %cst [1] : vector<32x1024xf32> to vector<32xf32>
    %3 = vector.shape_cast %2 : vector<32xf32> to vector<32x1xf32>
    %cst_2 = arith.constant 9.765625E-4 : f32
    %4 = vector.broadcast %cst_2 : f32 to vector<32x1xf32>
    %5 = arith.mulf %3, %4 : vector<32x1xf32>
    %c0_3 = arith.constant 0 : index
    %c0_4 = arith.constant 0 : index
    %6 = vector.load %arg3[%c0_3, %c0_4] : memref<32x2xf32, #tpu.memory_space<vmem>>, vector<32x2xf32>
    %7 = vector.broadcast %5 : vector<32x1xf32> to vector<32x2xf32>
    %8 = arith.mulf %7, %6 : vector<32x2xf32>
    %cst_5 = arith.constant dense<0.000000e+00> : vector<2xf32>
    %9 = vector.multi_reduction <add>, %8, %cst_5 [0] : vector<32x2xf32> to vector<2xf32>
    %10 = vector.shape_cast %9 : vector<2xf32> to vector<1x2xf32>
    %cst_6 = arith.constant 0.000000e+00 : f32
    %11 = vector.broadcast %cst_6 : f32 to vector<1x2xf32>
    %12 = arith.maximumf %10, %11 : vector<1x2xf32>
    %c0_7 = arith.constant 0 : index
    %c0_8 = arith.constant 0 : index
    %13 = vector.load %arg4[%c0_7, %c0_8] : memref<32x2xf32, #tpu.memory_space<vmem>>, vector<32x2xf32>
    %14 = vector.broadcast %12 : vector<1x2xf32> to vector<32x2xf32>
    %15 = arith.mulf %13, %14 : vector<32x2xf32>
    %cst_9 = arith.constant dense<0.000000e+00> : vector<32xf32>
    %16 = vector.multi_reduction <add>, %15, %cst_9 [1] : vector<32x2xf32> to vector<32xf32>
    %17 = vector.shape_cast %16 : vector<32xf32> to vector<32x1xf32>
    %c0_10 = arith.constant 0 : index
    %18 = memref.load %arg1[%c0_10] : memref<1xf32, #tpu.memory_space<smem>>
    %19 = vector.broadcast %18 : f32 to vector<32x1xf32>
    %20 = arith.cmpf oge, %17, %19 : vector<32x1xf32>
    %cst_11 = arith.constant 1.000000e+00 : f32
    %cst_12 = arith.constant 0.000000e+00 : f32
    %21 = vector.broadcast %cst_11 : f32 to vector<32x1xf32>
    %22 = vector.broadcast %cst_12 : f32 to vector<32x1xf32>
    %23 = arith.select %20, %21, %22 : vector<32x1xi1>, vector<32x1xf32>
    %24 = vector.broadcast %23 : vector<32x1xf32> to vector<32x1024xf32>
    %25 = arith.mulf %1, %24 : vector<32x1024xf32>
    %c0_13 = arith.constant 0 : index
    %c0_14 = arith.constant 0 : index
    %c0_15 = arith.constant 0 : index
    %26 = vector.load %arg5[%c0_13, %c0_14, %c0_15] : memref<1x32x1024xf32, #tpu.memory_space<vmem>>, vector<1x32x1024xf32>
    %27 = vector.shape_cast %26 : vector<1x32x1024xf32> to vector<32x1024xf32>
    %28 = vector.shape_cast %25 : vector<32x1024xf32> to vector<1x32x1024xf32>
    tpu.vector_store %arg5[%c0_13, %c0_14, %c0_15], %28 {strides = array<i32>} : memref<1x32x1024xf32, #tpu.memory_space<vmem>>, vector<1x32x1024xf32>,
    return
  }
  func.func @transform_0(%arg0: i32) -> i32 {
    %c0_i32 = arith.constant 0 : i32
    %c0_i32_0 = arith.constant 0 : i32
    return %c0_i32 : i32
  }
  func.func @transform_1(%arg0: i32) -> (i32, i32, i32) {
    %c0_i32 = arith.constant 0 : i32
    %c0_i32_0 = arith.constant 0 : i32
    %c0_i32_1 = arith.constant 0 : i32
    return %arg0, %c0_i32, %c0_i32_0 : i32, i32, i32
  }
  func.func @transform_2(%arg0: i32) -> (i32, i32) {
    %c0_i32 = arith.constant 0 : i32
    %c0_i32_0 = arith.constant 0 : i32
    %c0_i32_1 = arith.constant 0 : i32
    return %c0_i32, %c0_i32_0 : i32, i32
  }
  func.func @transform_3(%arg0: i32) -> (i32, i32) {
    %c0_i32 = arith.constant 0 : i32
    %c0_i32_0 = arith.constant 0 : i32
    %c0_i32_1 = arith.constant 0 : i32
    return %c0_i32, %c0_i32_0 : i32, i32
  }
  func.func @transform_4(%arg0: i32) -> (i32, i32, i32) {
    %c0_i32 = arith.constant 0 : i32
    %c0_i32_0 = arith.constant 0 : i32
    %c0_i32_1 = arith.constant 0 : i32
    return %arg0, %c0_i32, %c0_i32_0 : i32, i32, i32
  }
}

</mosaic_0001>

<llo_original>
// kernel: tpu_custom_call.1
$region0: #{tpu_custom_call.1}
  #allocation0 [shape = 'u32[]', space=smem, size = 0x4, offset = 0x4, fixed_abs, tag = 'smem constant byte address 0x4 - core index']
  #allocation1 [shape = 'u32[144,128]{1,0:T(1,128)}', space=vmem, size = 0x12000, scoped, tag = 'internal scratch']
  #allocation2 [shape = 'f32[1]{0:T(128)S(6)}', space=smem, size = 0x200, scoped, tag = 'scoped memory for tpu_custom_call.1']
  %s0 = inlined_call_operand.<no memory space> [shape: f32[1], index: 0, kind: input, shape index: {}]
  %s1 = inlined_call_operand.hbm [shape: f32[2,32,1024], index: 1, kind: input, shape index: {}]
  %s2 = inlined_call_operand.vmem [shape: f32[32,2], index: 2, kind: input, shape index: {}]
  %s3 = inlined_call_operand.vmem [shape: f32[32,2], index: 3, kind: input, shape index: {}]
  %s4 = inlined_call_operand.hbm [shape: f32[2,32,1024], index: 4, kind: output, shape index: {}]
  %s5 = sld [smem:[#allocation0]]
  $region53: #{tpu_custom_call.1} parent=0
    _
  %s7 = ssub.s32 1, %s5
  %s8 = scalar_select 0, %s7, %s5
  %9 = sst [smem:[#allocation2]] %s0
  $region1: #{tpu_custom_call.1} parent=0
    #allocation3 [shape = 'u8[262144]{0}', space=vmem, size = 0x40000, scoped, tag = 'input window, operand 1']
    #allocation4 [shape = 's32[2]{0}', space=sflag, size = 0x8, scoped, tag = 'scoped memory for tpu_custom_call.1']
    #allocation5 [shape = 's32[2]{0}', space=sflag, size = 0x8, scoped, tag = 'scoped memory for tpu_custom_call.1']
    #allocation6 [shape = 'u8[262144]{0}', space=vmem, size = 0x40000, scoped, tag = 'output window, operand 0']
    %10 = vsyncpa [#allocation4], 0
    %s11 = scalar_lea.sflag [#allocation4], 1
    %12 = vsyncpa %s11, 0
    %13 = vsyncpa [#allocation5], 0
    %s14 = scalar_lea.sflag [#allocation5], 1
    %15 = vsyncpa %s14, 0
    loop: start=0, step=1, limit=4
    $region2: #{tpu_custom_call.1} parent=1 // loop_pre_header
      _
    $region3: #{tpu_custom_call.1} parent=1 // loop_header
      %s17 = sphi 0, %s21
      %p18 = scmp.ge.s32.totalorder %s17, 4
      %s25 = sphi 0, %s25
      %s27 = sphi 0, %s25
      %s28 = sphi 0, %s27
      %s42 = sphi 0, %s28
      %s48 = sphi 0, %s50
      %s51 = sphi 0, %s48
      %s52 = sphi 0, %s51
      %s68 = sphi 0, %s52
      %s72 = sphi 0, %s72
      %s74 = sphi 0, %s72
      %s75 = sphi 0, %s74
      %s89 = sphi 0, %s75
      %s93 = sphi 0, %s93
      %s95 = sphi 0, %s93
      %s96 = sphi 0, %s95
      %s110 = sphi 0, %s96
      %s116 = sphi 0, %s118
      %s119 = sphi 0, %s116
      %s120 = sphi 0, %s119
      %s136 = sphi 0, %s120
    $region4: #{tpu_custom_call.1} parent=1 // loop_header_branch
      %20 = sbr.rel (%p18) target = $region8
    $region5: #{tpu_custom_call.1} parent=1 // loop_body
      %s22 = ssub.s32 %s17, 1
      %s23 = ssub.s32 %s17, 2
      %s24 = sadd.s32 %s17, 1
      %s26 = sadd.s32 %s25, 1
      %p29 = scmp.eq.s32.totalorder %s17, 1
      %p30 = scmp.ne.s32.totalorder %s25, %s27
      %p31 = scmp.eq.s32.totalorder %s17, 0
      %p32 = por %p30, %p31
      %p33 = scmp.ne.s32.totalorder %s25, %s27
      %p34 = scmp.eq.s32.totalorder %s22, 1
      %p35 = por %p33, %p34
      %p36 = scmp.ne.s32.totalorder %s27, %s28
      %p37 = scmp.eq.s32.totalorder %s22, 0
      %p38 = por %p36, %p37
      %p39 = scmp.ne.s32.totalorder %s27, %s28
      %p40 = scmp.eq.s32.totalorder %s23, 1
      %p41 = por %p39, %p40
      %p43 = scmp.ne.s32.totalorder %s28, %s42
      %p44 = scmp.eq.s32.totalorder %s23, 0
      %p45 = por %p43, %p44
      %s46 = ssub.s32 %s17, %s24
      %p47 = scmp.eq.s32.totalorder %s46, 0
      %s49 = sadd.s32 %s48, 1
      %s50 = scalar_select %p47, %s48, %s49
      %p53 = pneg %p47
      %p54 = scmp.eq.s32.totalorder %s17, 1
      %p55 = por %p53, %p54
      %p56 = scmp.ne.s32.totalorder %s48, %s51
      %p57 = scmp.eq.s32.totalorder %s17, 0
      %p58 = por %p56, %p57
      %p59 = scmp.ne.s32.totalorder %s48, %s51
      %p60 = scmp.eq.s32.totalorder %s22, 1
      %p61 = por %p59, %p60
      %p62 = scmp.ne.s32.totalorder %s51, %s52
      %p63 = scmp.eq.s32.totalorder %s22, 0
      %p64 = por %p62, %p63
      %p65 = scmp.ne.s32.totalorder %s51, %s52
      %p66 = scmp.eq.s32.totalorder %s23, 1
      %p67 = por %p65, %p66
      %p69 = scmp.ne.s32.totalorder %s52, %s68
      %p70 = scmp.eq.s32.totalorder %s23, 0
      %p71 = por %p69, %p70
      %s73 = sadd.s32 %s72, 1
      %p76 = scmp.eq.s32.totalorder %s17, 1
      %p77 = scmp.ne.s32.totalorder %s72, %s74
      %p78 = scmp.eq.s32.totalorder %s17, 0
      %p79 = por %p77, %p78
      %p80 = scmp.ne.s32.totalorder %s72, %s74
      %p81 = scmp.eq.s32.totalorder %s22, 1
      %p82 = por %p80, %p81
      %p83 = scmp.ne.s32.totalorder %s74, %s75
      %p84 = scmp.eq.s32.totalorder %s22, 0
      %p85 = por %p83, %p84
      %p86 = scmp.ne.s32.totalorder %s74, %s75
      %p87 = scmp.eq.s32.totalorder %s23, 1
      %p88 = por %p86, %p87
      %p90 = scmp.ne.s32.totalorder %s75, %s89
      %p91 = scmp.eq.s32.totalorder %s23, 0
      %p92 = por %p90, %p91
      %s94 = sadd.s32 %s93, 1
      %p97 = scmp.eq.s32.totalorder %s17, 1
      %p98 = scmp.ne.s32.totalorder %s93, %s95
      %p99 = scmp.eq.s32.totalorder %s17, 0
      %p100 = por %p98, %p99
      %p101 = scmp.ne.s32.totalorder %s93, %s95
      %p102 = scmp.eq.s32.totalorder %s22, 1
      %p103 = por %p101, %p102
      %p104 = scmp.ne.s32.totalorder %s95, %s96
      %p105 = scmp.eq.s32.totalorder %s22, 0
      %p106 = por %p104, %p105
      %p107 = scmp.ne.s32.totalorder %s95, %s96
      %p108 = scmp.eq.s32.totalorder %s23, 1
      %p109 = por %p107, %p108
      %p111 = scmp.ne.s32.totalorder %s96, %s110
      %p112 = scmp.eq.s32.totalorder %s23, 0
      %p113 = por %p111, %p112
      %s114 = ssub.s32 %s17, %s24
      %p115 = scmp.eq.s32.totalorder %s114, 0
      %s117 = sadd.s32 %s116, 1
      %s118 = scalar_select %p115, %s116, %s117
      %p121 = pneg %p115
      %p122 = scmp.eq.s32.totalorder %s17, 1
      %p123 = por %p121, %p122
      %p124 = scmp.ne.s32.totalorder %s116, %s119
      %p125 = scmp.eq.s32.totalorder %s17, 0
      %p126 = por %p124, %p125
      %p127 = scmp.ne.s32.totalorder %s116, %s119
      %p128 = scmp.eq.s32.totalorder %s22, 1
      %p129 = por %p127, %p128
      %p130 = scmp.ne.s32.totalorder %s119, %s120
      %p131 = scmp.eq.s32.totalorder %s22, 0
      %p132 = por %p130, %p131
      %p133 = scmp.ne.s32.totalorder %s119, %s120
      %p134 = scmp.eq.s32.totalorder %s23, 1
      %p135 = por %p133, %p134
      %p137 = scmp.ne.s32.totalorder %s120, %s136
      %p138 = scmp.eq.s32.totalorder %s23, 0
      %p139 = por %p137, %p138
      %p140 = scmp.le.s32.totalorder 1, %s17
      %p141 = scmp.lt.s32.totalorder %s17, 3
      %p142 = pnand %p140, %p141
      %p143 = pneg %p142
      // Predicated region
      $region9: #{tpu_custom_call.1} parent=5 // pred_check
        _
      $region10: #{tpu_custom_call.1} parent=5 // pred_check_branch
        %145 = sbr.rel (%p142) target = $region12
      $region11: #{tpu_custom_call.1} parent=5 // pred_region
        %s146 = ssub.s32 %s17, 1
        // Predicated region
        $region13: #{tpu_custom_call.1} parent=11 // pred_check
          %p147 = pneg %p38
        $region14: #{tpu_custom_call.1} parent=11 // pred_check_branch
          %149 = sbr.rel (%p147) target = $region16
        $region15: #{tpu_custom_call.1} parent=11 // pred_region
          _
        $region16: #{tpu_custom_call.1} parent=11 // pred_fallthru
          _
        // Predicated region
        $region17: #{tpu_custom_call.1} parent=11 // pred_check
          %p150 = pneg %p85
        $region18: #{tpu_custom_call.1} parent=11 // pred_check_branch
          %152 = sbr.rel (%p150) target = $region20
        $region19: #{tpu_custom_call.1} parent=11 // pred_region
          _
        $region20: #{tpu_custom_call.1} parent=11 // pred_fallthru
          _
        // Predicated region
        $region21: #{tpu_custom_call.1} parent=11 // pred_check
          %p153 = pneg %p106
        $region22: #{tpu_custom_call.1} parent=11 // pred_check_branch
          %155 = sbr.rel (%p153) target = $region24
        $region23: #{tpu_custom_call.1} parent=11 // pred_region
          _
        $region24: #{tpu_custom_call.1} parent=11 // pred_fallthru
          _
      $region12: #{tpu_custom_call.1} parent=5 // pred_fallthru
        _
      %p156 = scmp.lt.s32.totalorder %s17, 2
      // Predicated region
      $region25: #{tpu_custom_call.1} parent=5 // pred_check
        %p157 = pneg %p156
      $region26: #{tpu_custom_call.1} parent=5 // pred_check_branch
        %159 = sbr.rel (%p157) target = $region28
      $region27: #{tpu_custom_call.1} parent=5 // pred_region
        // Predicated region
        $region29: #{tpu_custom_call.1} parent=27 // pred_check
          %p160 = pneg %p58
        $region30: #{tpu_custom_call.1} parent=27 // pred_check_branch
          %162 = sbr.rel (%p160) target = $region32
        $region31: #{tpu_custom_call.1} parent=27 // pred_region
          %s163 = sand.u32 %s48, 1
          %s164 = scalar_lea.sflag [#allocation4], %s163
          %s165 = sand.u32 %s48, 1
          %s166 = smul.addr %s165, 256
          %s167 = scalar_lea.vmem [#allocation3], %s166
          %s169 = ssub.s32 4096, 4096
          %170 = vsyncadd %s164, %s169
          %s171 = smul.addr %s17, 32
          %s172 = smul.addr %s171, 128
          %s173 = scalar_lea.hbm %s1, %s172
          %s174 = sshll.u32 %s167, 4
          %s175 = int_to_ptr.vmem [resolvable:$true] %s174
          %180 = dma.hbm_to_vmem [thread:$0]  %s173, 4096, %s175, %s164, 1024, 1024, 64
        $region32: #{tpu_custom_call.1} parent=27 // pred_fallthru
          _
      $region28: #{tpu_custom_call.1} parent=5 // pred_fallthru
        _
      %p181 = scmp.le.s32.totalorder 1, %s17
      %p182 = scmp.lt.s32.totalorder %s17, 3
      %p183 = pnand %p181, %p182
      %p184 = pneg %p183
      // Predicated region
      $region33: #{tpu_custom_call.1} parent=5 // pred_check
        _
      $region34: #{tpu_custom_call.1} parent=5 // pred_check_branch
        %186 = sbr.rel (%p183) target = $region36
      $region35: #{tpu_custom_call.1} parent=5 // pred_region
        %s187 = ssub.s32 %s17, 1
        %s188 = sand.u32 %s51, 1
        %s189 = scalar_lea.sflag [#allocation4], %s188
        %s190 = sand.u32 %s51, 1
        %s191 = smul.addr %s190, 256
        %s192 = scalar_lea.vmem [#allocation3], %s191
        // Predicated region
        $region37: #{tpu_custom_call.1} parent=35 // pred_check
          %p193 = pneg %p64
        $region38: #{tpu_custom_call.1} parent=35 // pred_check_branch
          %195 = sbr.rel (%p193) target = $region40
        $region39: #{tpu_custom_call.1} parent=35 // pred_region
          %196 = dma.done %s189, 4096
        $region40: #{tpu_custom_call.1} parent=35 // pred_fallthru
          _
        %p197 = pneg %p38
        %p198 = pneg %p35
        %s199 = sand.u32 %s51, 1
        %s200 = scalar_lea.sflag [#allocation4], %s199
        %s201 = sand.u32 %s51, 1
        %s202 = smul.addr %s201, 256
        %s203 = scalar_lea.vmem [#allocation3], %s202
        %p204 = pneg %p64
        %p205 = pneg %p61
        %p206 = pneg %p85
        %p207 = pneg %p82
        %p208 = pneg %p106
        %p209 = pneg %p103
        %p210 = pneg %p132
        %p211 = pneg %p129
        %s212 = sand.u32 %s119, 1
        %s213 = scalar_lea.sflag [#allocation5], %s212
        %s214 = sand.u32 %s119, 1
        %s215 = smul.addr %s214, 256
        %s216 = scalar_lea.vmem [#allocation6], %s215
        %v217 = vld [vmem:[%s192] sm:$0xff]
        %v218 = vld [vmem:[%s192 + $0x8] sm:$0xff]
        %v219 = vld [vmem:[%s192 + $0x10] sm:$0xff]
        %v220 = vld [vmem:[%s192 + $0x18] sm:$0xff]
        %v221 = vld [vmem:[%s192 + $0x20] sm:$0xff]
        %v222 = vld [vmem:[%s192 + $0x28] sm:$0xff]
        %v223 = vld [vmem:[%s192 + $0x30] sm:$0xff]
        %v224 = vld [vmem:[%s192 + $0x38] sm:$0xff]
        %v225 = vld [vmem:[%s192 + $0x40] sm:$0xff]
        %v226 = vld [vmem:[%s192 + $0x48] sm:$0xff]
        %v227 = vld [vmem:[%s192 + $0x50] sm:$0xff]
        %v228 = vld [vmem:[%s192 + $0x58] sm:$0xff]
        %v229 = vld [vmem:[%s192 + $0x60] sm:$0xff]
        %v230 = vld [vmem:[%s192 + $0x68] sm:$0xff]
        %v231 = vld [vmem:[%s192 + $0x70] sm:$0xff]
        %v232 = vld [vmem:[%s192 + $0x78] sm:$0xff]
        %v233 = vld [vmem:[%s192 + $0x80] sm:$0xff]
        %v234 = vld [vmem:[%s192 + $0x88] sm:$0xff]
        %v235 = vld [vmem:[%s192 + $0x90] sm:$0xff]
        %v236 = vld [vmem:[%s192 + $0x98] sm:$0xff]
        %v237 = vld [vmem:[%s192 + $0xa0] sm:$0xff]
        %v238 = vld [vmem:[%s192 + $0xa8] sm:$0xff]
        %v239 = vld [vmem:[%s192 + $0xb0] sm:$0xff]
        %v240 = vld [vmem:[%s192 + $0xb8] sm:$0xff]
        %v241 = vld [vmem:[%s192 + $0xc0] sm:$0xff]
        %v242 = vld [vmem:[%s192 + $0xc8] sm:$0xff]
        %v243 = vld [vmem:[%s192 + $0xd0] sm:$0xff]
        %v244 = vld [vmem:[%s192 + $0xd8] sm:$0xff]
        %v245 = vld [vmem:[%s192 + $0xe0] sm:$0xff]
        %v246 = vld [vmem:[%s192 + $0xe8] sm:$0xff]
        %v247 = vld [vmem:[%s192 + $0xf0] sm:$0xff]
        %v248 = vld [vmem:[%s192 + $0xf8] sm:$0xff]
        %v249 = vadd.f32 %v217, %v218
        %v250 = vadd.f32 %v249, %v219
        %v251 = vadd.f32 %v250, %v220
        %v252 = vadd.f32 %v251, %v221
        %v253 = vadd.f32 %v252, %v222
        %v254 = vadd.f32 %v253, %v223
        %v255 = vadd.f32 %v254, %v224
        %256 = vadd.xlane.f32.xlu0 %v255
        %v257 = vpop.xlane.xlu0 %256
        %v258 = vadd.f32 %v225, %v226
        %v259 = vadd.f32 %v258, %v227
        %v260 = vadd.f32 %v259, %v228
        %v261 = vadd.f32 %v260, %v229
        %v262 = vadd.f32 %v261, %v230
        %v263 = vadd.f32 %v262, %v231
        %v264 = vadd.f32 %v263, %v232
        %265 = vadd.xlane.f32.xlu0 %v264
        %v266 = vpop.xlane.xlu0 %265
        %v267 = vadd.f32 %v233, %v234
        %v268 = vadd.f32 %v267, %v235
        %v269 = vadd.f32 %v268, %v236
        %v270 = vadd.f32 %v269, %v237
        %v271 = vadd.f32 %v270, %v238
        %v272 = vadd.f32 %v271, %v239
        %v273 = vadd.f32 %v272, %v240
        %274 = vadd.xlane.f32.xlu0 %v273
        %v275 = vpop.xlane.xlu0 %274
        %v276 = vadd.f32 %v241, %v242
        %v277 = vadd.f32 %v276, %v243
        %v278 = vadd.f32 %v277, %v244
        %v279 = vadd.f32 %v278, %v245
        %v280 = vadd.f32 %v279, %v246
        %v281 = vadd.f32 %v280, %v247
        %v282 = vadd.f32 %v281, %v248
        %283 = vadd.xlane.f32.xlu0 %v282
        %v284 = vpop.xlane.xlu0 %283
        %v285 = vmul.f32 %v257, 0.0009765625
        %v286 = vmul.f32 %v266, 0.0009765625
        %v287 = vmul.f32 %v275, 0.0009765625
        %v288 = vmul.f32 %v284, 0.0009765625
        %v289 = vld [vmem:[%s2] sm:$0xff]
        %v290 = vld [vmem:[%s2 + $0x8] sm:$0xff]
        %v291 = vld [vmem:[%s2 + $0x10] sm:$0xff]
        %v292 = vld [vmem:[%s2 + $0x18] sm:$0xff]
        %v293 = vmul.f32 %v285, %v289
        %v294 = vmul.f32 %v286, %v290
        %v295 = vmul.f32 %v287, %v291
        %v296 = vmul.f32 %v288, %v292
        %vm297 = vcmask 15360
        %v298 = vsel %vm297, %v293, 0.0
        %v299 = vsel %vm297, %v294, 0.0
        %v300 = vadd.f32 %v298, %v299
        %v301 = vsel %vm297, %v295, 0.0
        %v302 = vadd.f32 %v300, %v301
        %v303 = vsel %vm297, %v296, 0.0
        %v304 = vadd.f32 %v302, %v303
        %v305 = vrot.slane %v304, 4
        %v306 = vadd.f32 %v304, %v305
        %v307 = vrot.slane %v306, 2
        %v308 = vadd.f32 %v306, %v307
        %v309 = vrot.slane %v308, 1
        %v310 = vadd.f32 %v308, %v309
        %v311 = vmax.f32 %v310, 0.0
        %v312 = vld [vmem:[%s3] sm:$0xff]
        %v313 = vld [vmem:[%s3 + $0x8] sm:$0xff]
        %v314 = vld [vmem:[%s3 + $0x10] sm:$0xff]
        %v315 = vld [vmem:[%s3 + $0x18] sm:$0xff]
        %v316 = vmul.f32 %v312, %v311
        %v317 = vmul.f32 %v313, %v311
        %v318 = vmul.f32 %v314, %v311
        %v319 = vmul.f32 %v315, %v311
        %v320 = vsel %vm297, %v316, 0.0
        %321 = vadd.xlane.f32.xlu0 %v320
        %v322 = vpop.xlane.xlu0 %321
        %v323 = vsel %vm297, %v317, 0.0
        %324 = vadd.xlane.f32.xlu0 %v323
        %v325 = vpop.xlane.xlu0 %324
        %v326 = vsel %vm297, %v318, 0.0
        %327 = vadd.xlane.f32.xlu0 %v326
        %v328 = vpop.xlane.xlu0 %327
        %v329 = vsel %vm297, %v319, 0.0
        %330 = vadd.xlane.f32.xlu0 %v329
        %v331 = vpop.xlane.xlu0 %330
        %s332 = sld [smem:[#allocation2]]
        %v333 = vstv %s332
        %vm334 = vcmp.ge.f32.partialorder %v322, %v333
        %vm335 = vcmp.ge.f32.partialorder %v325, %v333
        %vm336 = vcmp.ge.f32.partialorder %v328, %v333
        %vm337 = vcmp.ge.f32.partialorder %v331, %v333
        %v338 = vsel %vm334, 1.0, 0.0
        %v339 = vsel %vm335, 1.0, 0.0
        %v340 = vsel %vm336, 1.0, 0.0
        %v341 = vsel %vm337, 1.0, 0.0
        %v342 = vmul.f32 %v217, %v338
        %v343 = vmul.f32 %v218, %v338
        %v344 = vmul.f32 %v219, %v338
        %v345 = vmul.f32 %v220, %v338
        %v346 = vmul.f32 %v221, %v338
        %v347 = vmul.f32 %v222, %v338
        %v348 = vmul.f32 %v223, %v338
        %v349 = vmul.f32 %v224, %v338
        %v350 = vmul.f32 %v225, %v339
        %v351 = vmul.f32 %v226, %v339
        %v352 = vmul.f32 %v227, %v339
        %v353 = vmul.f32 %v228, %v339
        %v354 = vmul.f32 %v229, %v339
        %v355 = vmul.f32 %v230, %v339
        %v356 = vmul.f32 %v231, %v339
        %v357 = vmul.f32 %v232, %v339
        %v358 = vmul.f32 %v233, %v340
        %v359 = vmul.f32 %v234, %v340
        %v360 = vmul.f32 %v235, %v340
        %v361 = vmul.f32 %v236, %v340
        %v362 = vmul.f32 %v237, %v340
        %v363 = vmul.f32 %v238, %v340
        %v364 = vmul.f32 %v239, %v340
        %v365 = vmul.f32 %v240, %v340
        %v366 = vmul.f32 %v241, %v341
        %v367 = vmul.f32 %v242, %v341
        %v368 = vmul.f32 %v243, %v341
        %v369 = vmul.f32 %v244, %v341
        %v370 = vmul.f32 %v245, %v341
        %v371 = vmul.f32 %v246, %v341
        %v372 = vmul.f32 %v247, %v341
        %v373 = vmul.f32 %v248, %v341
        %374 = vst [vmem:[%s216] sm:$0xff] %v342
        %375 = vst [vmem:[%s216 + $0x8] sm:$0xff] %v343
        %376 = vst [vmem:[%s216 + $0x10] sm:$0xff] %v344
        %377 = vst [vmem:[%s216 + $0x18] sm:$0xff] %v345
        %378 = vst [vmem:[%s216 + $0x20] sm:$0xff] %v346
        %379 = vst [vmem:[%s216 + $0x28] sm:$0xff] %v347
        %380 = vst [vmem:[%s216 + $0x30] sm:$0xff] %v348
        %381 = vst [vmem:[%s216 + $0x38] sm:$0xff] %v349
        %382 = vst [vmem:[%s216 + $0x40] sm:$0xff] %v350
        %383 = vst [vmem:[%s216 + $0x48] sm:$0xff] %v351
        %384 = vst [vmem:[%s216 + $0x50] sm:$0xff] %v352
        %385 = vst [vmem:[%s216 + $0x58] sm:$0xff] %v353
        %386 = vst [vmem:[%s216 + $0x60] sm:$0xff] %v354
        %387 = vst [vmem:[%s216 + $0x68] sm:$0xff] %v355
        %388 = vst [vmem:[%s216 + $0x70] sm:$0xff] %v356
        %389 = vst [vmem:[%s216 + $0x78] sm:$0xff] %v357
        %390 = vst [vmem:[%s216 + $0x80] sm:$0xff] %v358
        %391 = vst [vmem:[%s216 + $0x88] sm:$0xff] %v359
        %392 = vst [vmem:[%s216 + $0x90] sm:$0xff] %v360
        %393 = vst [vmem:[%s216 + $0x98] sm:$0xff] %v361
        %394 = vst [vmem:[%s216 + $0xa0] sm:$0xff] %v362
        %395 = vst [vmem:[%s216 + $0xa8] sm:$0xff] %v363
        %396 = vst [vmem:[%s216 + $0xb0] sm:$0xff] %v364
        %397 = vst [vmem:[%s216 + $0xb8] sm:$0xff] %v365
        %398 = vst [vmem:[%s216 + $0xc0] sm:$0xff] %v366
        %399 = vst [vmem:[%s216 + $0xc8] sm:$0xff] %v367
        %400 = vst [vmem:[%s216 + $0xd0] sm:$0xff] %v368
        %401 = vst [vmem:[%s216 + $0xd8] sm:$0xff] %v369
        %402 = vst [vmem:[%s216 + $0xe0] sm:$0xff] %v370
        %403 = vst [vmem:[%s216 + $0xe8] sm:$0xff] %v371
        %404 = vst [vmem:[%s216 + $0xf0] sm:$0xff] %v372
        %405 = vst [vmem:[%s216 + $0xf8] sm:$0xff] %v373
        %s406 = sand.u32 %s119, 1
        %s407 = scalar_lea.sflag [#allocation5], %s406
        %s408 = sand.u32 %s119, 1
        %s409 = smul.addr %s408, 256
        %s410 = scalar_lea.vmem [#allocation6], %s409
        // Predicated region
        $region41: #{tpu_custom_call.1} parent=35 // pred_check
          %p411 = pneg %p129
        $region42: #{tpu_custom_call.1} parent=35 // pred_check_branch
          %413 = sbr.rel (%p411) target = $region44
        $region43: #{tpu_custom_call.1} parent=35 // pred_region
          %s415 = ssub.s32 4096, 4096
          %416 = vsyncadd %s407, %s415
          %s417 = smul.addr %s22, 32
          %s418 = smul.addr %s417, 128
          %s419 = scalar_lea.hbm %s4, %s418
          %s420 = sshll.u32 %s410, 4
          %s421 = int_to_ptr.vmem [resolvable:$true] %s420
          %426 = dma.vmem_to_hbm [thread:$0]  %s421, 4096, %s419, %s407, 1024, 1024, 64
        $region44: #{tpu_custom_call.1} parent=35 // pred_fallthru
          _
      $region36: #{tpu_custom_call.1} parent=5 // pred_fallthru
        _
      %p427 = scmp.le.s32.totalorder 2, %s17
      // Predicated region
      $region45: #{tpu_custom_call.1} parent=5 // pred_check
        %p428 = pneg %p427
      $region46: #{tpu_custom_call.1} parent=5 // pred_check_branch
        %430 = sbr.rel (%p428) target = $region48
      $region47: #{tpu_custom_call.1} parent=5 // pred_region
        %s431 = ssub.s32 %s17, 2
        // Predicated region
        $region49: #{tpu_custom_call.1} parent=47 // pred_check
          %p432 = pneg %p135
        $region50: #{tpu_custom_call.1} parent=47 // pred_check_branch
          %434 = sbr.rel (%p432) target = $region52
        $region51: #{tpu_custom_call.1} parent=47 // pred_region
          %s435 = sand.u32 %s120, 1
          %s436 = scalar_lea.sflag [#allocation5], %s435
          %s437 = sand.u32 %s120, 1
          %s438 = smul.addr %s437, 256
          %s439 = scalar_lea.vmem [#allocation6], %s438
          %440 = dma.done %s436, 4096
        $region52: #{tpu_custom_call.1} parent=47 // pred_fallthru
          _
      $region48: #{tpu_custom_call.1} parent=5 // pred_fallthru
        _
    $region6: #{tpu_custom_call.1} parent=1 // loop_footer
      %s21 = sadd.s32 1, %s17
    $region7: #{tpu_custom_call.1} parent=1 // loop_footer_branch
      %16 = sbr.rel target = $region3
    $region8: #{tpu_custom_call.1} parent=1 // loop_exit
      _
    %441 = vsyncpa [#allocation4], 1
    %s442 = scalar_lea.sflag [#allocation4], 1
    %443 = vsyncpa %s442, 1
    %444 = vsyncpa [#allocation5], 1
    %s445 = scalar_lea.sflag [#allocation5], 1
    %446 = vsyncpa %s445, 1

</llo_original>
